<compile_context>
chip_gen: v7x
topology: tpu7x:2x2x1
jax: 0.10.0
libtpu: 0.0.40
codegen_flags: <defaults>
</compile_context>

<pallas_src>
import jax
import jax.numpy as jnp
from jax.experimental import pallas as pl
from jax.experimental.pallas import tpu as pltpu


_DEFAULT_VMEM_BYTES = 64 * 1024 * 1024  # conservative default (v7x per-core)


# --------------------------------------------------------------------------
# Budgets & tile selection
# --------------------------------------------------------------------------
def _vmem_limit_bytes() -> int:
    """Generation-aware scoped-VMEM limit (explicitly passed to the compiler)."""
    vmem_phys = _DEFAULT_VMEM_BYTES
    try:
        info = pltpu.get_tpu_info()
        cap = getattr(info, "vmem_capacity_bytes", None)
        if cap:
            vmem_phys = int(cap)
    except Exception:
        pass
    # Leave headroom for compiler-internal scratch:
    #   128 MiB parts (v5e/v6e) -> 96 MiB, 64 MiB parts (v7x) -> 48 MiB.
    return min((vmem_phys * 3) // 4, 96 * 1024 * 1024)


def _block_elem_budget(budget_bytes: int, in_itemsize: int) -> int:
    # Dominant per-block VMEM users: 2 pipeline buffers of the input block
    # plus (worst case) an f32-widened temp of one block.
    per_elem = 2 * in_itemsize + 4
    return max(8 * 128, (budget_bytes * 2) // (3 * per_elem))


def _divisors(n: int):
    out = set()
    i = 1
    while i * i <= n:
        if n % i == 0:
            out.add(i)
            out.add(n // i)
        i += 1
    return sorted(out)


def _largest_tile(dim: int, unit: int, cap: int) -> int:
    """Largest t dividing `dim` with (t % unit == 0 or t == dim) and t <= cap.
    Falls back to the smallest legal tile if nothing fits under `cap`."""
    cap = max(int(cap), 1)
    legal = [d for d in _divisors(dim) if d % unit == 0 or d == dim]
    fitting = [d for d in legal if d <= cap]
    if fitting:
        return max(fitting)
    return min(legal)


def _shrink_tile(dim: int, unit: int, cur: int) -> int:
    """Largest legal tile strictly smaller than `cur`, or `cur` if impossible."""
    if cur <= unit or dim % unit:
        return cur
    return _largest_tile(dim, unit, cur // 2)


def _out_and_acc_dtype(dt):
    dt = jnp.dtype(dt)
    if jnp.issubdtype(dt, jnp.floating):
        return dt, jnp.promote_types(dt, jnp.float32)
    # Integral / bool inputs: accumulate & return int32.
    # TODO(synk): PyTorch promotes integral/bool sums to int64; matching that
    # exactly requires jax_enable_x64.
    return jnp.dtype(jnp.int32), jnp.dtype(jnp.int32)


def _choose_tiles_mid(pre, r, post, in_itemsize, out_itemsize, vmem_limit):
    budget = (vmem_limit * 85) // 100
    block_elems = _block_elem_budget(budget, in_itemsize)

    min_p = pre if pre % 8 else 8          # only legal p-tile when pre % 8 != 0 is `pre`
    min_r = r if r % 8 else 8

    post_tile = _largest_tile(
        post, 128, max(128, block_elems // max(1, min_p * min_r)))
    r_tile = _largest_tile(
        r, 8, max(1, block_elems // max(1, min_p * post_tile)))
    p_tile = _largest_tile(
        pre, 8, max(1, block_elems // max(1, r_tile * post_tile)))

    def resident(pt, rt, qt):
        in_blk, out_blk = pt * rt * qt, pt * qt
        return (2 * in_blk * in_itemsize + in_blk * 4
                + out_blk * 4 + 2 * out_blk * out_itemsize)

    # Safety clamp against the full resident-set estimate.
    for _ in range(64):
        if resident(p_tile, r_tile, post_tile) <= budget:
            break
        nr = _shrink_tile(r, 8, r_tile)
        if nr < r_tile:
            r_tile = nr
            continue
        np_ = _shrink_tile(pre, 8, p_tile)
        if np_ < p_tile:
            p_tile = np_
            continue
        nq = _shrink_tile(post, 128, post_tile)
        if nq < post_tile:
            post_tile = nq
            continue
        # TODO(synk): dims not divisible by 8/128 and too large to fit one
        # block would need pl.cdiv partial blocks or padding; let the
        # compiler try as-is.
        break

    # Megacore / pipelining: aim for >=2 (>=4 for larger inputs) parallel blocks.
    total_bytes = pre * r * post * in_itemsize
    if total_bytes >= (2 << 20):
        target = 4 if total_bytes >= (8 << 20) else 2
        for _ in range(16):
            if (pre // p_tile) * (post // post_tile) >= target:
                break
            np_ = _shrink_tile(pre, 8, p_tile)
            if np_ < p_tile and np_ * post_tile >= 8 * 128:
                p_tile = np_
                continue
            nq = _shrink_tile(post, 128, post_tile)
            if nq < post_tile and p_tile * nq >= 8 * 128:
                post_tile = nq
                continue
            break

    return p_tile, r_tile, post_tile


def _choose_tiles_last(rows, row_width, r, in_itemsize, out_itemsize, vmem_limit):
    """Tiles for a (rows, row_width, r) lane-axis reduction (row_width may be 1)."""
    budget = (vmem_limit * 85) // 100
    block_elems = _block_elem_budget(budget, in_itemsize)

    min_rows = rows if rows % 8 else 8
    r_tile = _largest_tile(
        r, 128, max(1, block_elems // max(1, min_rows * row_width)))
    rows_tile = _largest_tile(
        rows, 8, max(1, block_elems // max(1, r_tile * row_width)))

    def resident(rt_rows, rt_r):
        in_blk = rt_rows * row_width * rt_r
        out_blk = rt_rows * row_width
        return (2 * in_blk * in_itemsize + in_blk * 4
                + out_blk * 4 + 2 * out_blk * out_itemsize)

    for _ in range(64):
        if resident(rows_tile, r_tile) <= budget:
            break
        nr = _shrink_tile(r, 128, r_tile)
        if nr < r_tile:
            r_tile = nr
            continue
        ng = _shrink_tile(rows, 8, rows_tile)
        if ng < rows_tile:
            rows_tile = ng
            continue
        break

    total_bytes = rows * row_width * r * in_itemsize
    if total_bytes >= (2 << 20):
        target = 4 if total_bytes >= (8 << 20) else 2
        for _ in range(16):
            if rows // rows_tile >= target:
                break
            ng = _shrink_tile(rows, 8, rows_tile)
            if ng < rows_tile:
                rows_tile = ng
                continue
            break

    return rows_tile, r_tile


# --------------------------------------------------------------------------
# Kernels
# --------------------------------------------------------------------------
def _sum_mid_kernel(x_ref, o_ref, acc_ref):
    # x_ref: (p_tile, r_tile, post_tile) -- reduce over the sublane (middle) axis.
    k = pl.program_id(2)

    @pl.when(k == 0)
    def _init():
        acc_ref[...] = jnp.zeros_like(acc_ref)

    acc_ref[...] += jnp.sum(x_ref[...], axis=1, dtype=acc_ref.dtype)

    @pl.when(k == pl.num_programs(2) - 1)
    def _store():
        o_ref[...] = acc_ref[...].astype(o_ref.dtype)


def _sum_last_dense_kernel(x_ref, o_ref, acc_ref):
    # x_ref: (g_tile, 128, r_tile) -- reduce over the lane axis, lane-dense output.
    k = pl.program_id(1)

    @pl.when(k == 0)
    def _init():
        acc_ref[...] = jnp.zeros_like(acc_ref)

    acc_ref[...] += jnp.sum(x_ref[...], axis=-1, dtype=acc_ref.dtype)

    @pl.when(k == pl.num_programs(1) - 1)
    def _store():
        o_ref[...] = acc_ref[...].astype(o_ref.dtype)


def _sum_last_narrow_kernel(x_ref, o_ref, acc_ref):
    # x_ref: (p_tile, r_tile) -- reduce over the lane axis; narrow (p_tile, 1) output.
    k = pl.program_id(1)

    @pl.when(k == 0)
    def _init():
        acc_ref[...] = jnp.zeros_like(acc_ref)

    acc_ref[...] += jnp.sum(x_ref[...], axis=-1, keepdims=True, dtype=acc_ref.dtype)

    @pl.when(k == pl.num_programs(1) - 1)
    def _store():
        o_ref[...] = acc_ref[...].astype(o_ref.dtype)


# --------------------------------------------------------------------------
# pallas_call wrappers
# --------------------------------------------------------------------------
def _sum_mid_axis(x3d, out_dtype, acc_dtype):
    """(pre, R, post) -> (pre, post), summing over axis 1."""
    pre, r, post = x3d.shape
    in_isz = jnp.dtype(x3d.dtype).itemsize
    out_isz = jnp.dtype(out_dtype).itemsize
    vmem_limit = _vmem_limit_bytes()
    p_tile, r_tile, post_tile = _choose_tiles_mid(
        pre, r, post, in_isz, out_isz, vmem_limit)

    # TODO(synk): when post < 128, regroup zero-copy to (pre, R//k, k*post)
    # with k*post a multiple of 128 and fold the k sub-groups in-kernel to
    # restore lane-dense DMA.

    grid = (pre // p_tile, post // post_tile, r // r_tile)
    return pl.pallas_call(
        _sum_mid_kernel,
        out_shape=jax.ShapeDtypeStruct((pre, post), out_dtype),
        grid_spec=pltpu.PrefetchScalarGridSpec(
            num_scalar_prefetch=0,
            grid=grid,
            in_specs=[pl.BlockSpec((p_tile, r_tile, post_tile),
                                   lambda i, j, k: (i, k, j))],
            out_specs=pl.BlockSpec((p_tile, post_tile),
                                   lambda i, j, k: (i, j)),
            scratch_shapes=[pltpu.VMEM((p_tile, post_tile), acc_dtype)],
        ),
        compiler_params=pltpu.CompilerParams(
            dimension_semantics=("parallel", "parallel", "arbitrary"),
            vmem_limit_bytes=vmem_limit,
        ),
    )(x3d)


def _sum_last_axis_dense(x2d, out_dtype, acc_dtype):
    """(pre, R) -> (pre, 1) with pre % 128 == 0, lane-dense (g, 128) output."""
    pre, r = x2d.shape
    g = pre // 128
    x3d = x2d.reshape(g, 128, r)                       # zero-copy regroup
    in_isz = jnp.dtype(x2d.dtype).itemsize
    out_isz = jnp.dtype(out_dtype).itemsize
    vmem_limit = _vmem_limit_bytes()
    g_tile, r_tile = _choose_tiles_last(g, 128, r, in_isz, out_isz, vmem_limit)

    grid = (g // g_tile, r // r_tile)
    out = pl.pallas_call(
        _sum_last_dense_kernel,
        out_shape=jax.ShapeDtypeStruct((g, 128), out_dtype),
        grid_spec=pltpu.PrefetchScalarGridSpec(
            num_scalar_prefetch=0,
            grid=grid,
            in_specs=[pl.BlockSpec((g_tile, 128, r_tile),
                                   lambda i, k: (i, 0, k))],
            out_specs=pl.BlockSpec((g_tile, 128), lambda i, k: (i, 0)),
            scratch_shapes=[pltpu.VMEM((g_tile, 128), acc_dtype)],
        ),
        compiler_params=pltpu.CompilerParams(
            dimension_semantics=("parallel", "arbitrary"),
            vmem_limit_bytes=vmem_limit,
        ),
    )(x3d)
    return out.reshape(pre, 1)


def _sum_last_axis_narrow(x2d, out_dtype, acc_dtype):
    """(pre, R) -> (pre, 1), pre not a multiple of 128 (narrow-store fallback)."""
    pre, r = x2d.shape
    in_isz = jnp.dtype(x2d.dtype).itemsize
    out_isz = jnp.dtype(out_dtype).itemsize
    vmem_limit = _vmem_limit_bytes()
    p_tile, r_tile = _choose_tiles_last(pre, 1, r, in_isz, out_isz, vmem_limit)

    grid = (pre // p_tile, r // r_tile)
    return pl.pallas_call(
        _sum_last_narrow_kernel,
        out_shape=jax.ShapeDtypeStruct((pre, 1), out_dtype),
        grid_spec=pltpu.PrefetchScalarGridSpec(
            num_scalar_prefetch=0,
            grid=grid,
            in_specs=[pl.BlockSpec((p_tile, r_tile), lambda i, k: (i, k))],
            out_specs=pl.BlockSpec((p_tile, 1), lambda i, k: (i, 0)),
            scratch_shapes=[pltpu.VMEM((p_tile, 1), acc_dtype)],
        ),
        compiler_params=pltpu.CompilerParams(
            dimension_semantics=("parallel", "arbitrary"),
            vmem_limit_bytes=vmem_limit,
        ),
    )(x2d)


# --------------------------------------------------------------------------
# Public forward (equivalent of torch Sum(dim, keep_dim).forward(x))
# --------------------------------------------------------------------------
def sum_forward(x: jax.Array, dim: int, keep_dim: bool = False) -> jax.Array:
    ndim = x.ndim
    if ndim == 0:
        raise ValueError("sum_forward requires an input with at least 1 dim")
    dim = dim % ndim
    shape = x.shape
    out_dtype, acc_dtype = _out_and_acc_dtype(x.dtype)

    pre = 1
    for s in shape[:dim]:
        pre *= s
    r = shape[dim]
    post = 1
    for s in shape[dim + 1:]:
        post *= s

    out_shape = shape[:dim] + ((1,) if keep_dim else ()) + shape[dim + 1:]

    if pre == 0 or r == 0 or post == 0:
        return jnp.zeros(out_shape, out_dtype)

    if post == 1:
        x2d = x.reshape(pre, r)
        if pre % 128 == 0:
            out = _sum_last_axis_dense(x2d, out_dtype, acc_dtype)    # (pre, 1)
        else:
            out = _sum_last_axis_narrow(x2d, out_dtype, acc_dtype)   # (pre, 1)
    else:
        out = _sum_mid_axis(x.reshape(pre, r, post), out_dtype, acc_dtype)  # (pre, post)

    return out.reshape(out_shape)


if __name__ == "__main__":
    key = jax.random.PRNGKey(0)
    x = jax.random.normal(key, (2, 4, 16, 16), dtype=jnp.float32)  # NCHW

    # Sum over channel dim (dim=1), keep_dim=False
    y = sum_forward(x, dim=1, keep_dim=False)
    y = jax.block_until_ready(y)
    ref = jnp.sum(x, axis=1)
    assert y.shape == ref.shape, (y.shape, ref.shape)
    assert jnp.allclose(y, ref, atol=1e-5, rtol=1e-5)

    # Sum over the innermost dim (dim=3), keep_dim=True  (pre = 2*4*16 = 128)
    y2 = sum_forward(x, dim=3, keep_dim=True)
    y2 = jax.block_until_ready(y2)
    ref2 = jnp.sum(x, axis=3, keepdims=True)
    assert y2.shape == ref2.shape, (y2.shape, ref2.shape)
    assert jnp.allclose(y2, ref2, atol=1e-5, rtol=1e-5)

    # Sum over the leading dim (dim=0), keep_dim=False  (pre == 1 path)
    y3 = sum_forward(x, dim=0, keep_dim=False)
    y3 = jax.block_until_ready(y3)
    ref3 = jnp.sum(x, axis=0)
    assert y3.shape == ref3.shape, (y3.shape, ref3.shape)
    assert jnp.allclose(y3, ref3, atol=1e-5, rtol=1e-5)

    # Innermost-dim sum on a non-multiple-of-128 row count (narrow fallback)
    x4 = jax.random.normal(key, (2, 3, 5, 16), dtype=jnp.float32)
    y4 = sum_forward(x4, dim=3, keep_dim=False)
    y4 = jax.block_until_ready(y4)
    ref4 = jnp.sum(x4, axis=3)
    assert y4.shape == ref4.shape, (y4.shape, ref4.shape)
    assert jnp.allclose(y4, ref4, atol=1e-5, rtol=1e-5)

    print("KERNEL_OK")
</pallas_src>

<mosaic_0001>
module attributes {stable_mosaic.version = 11 : i64} {
  func.func @_sum_mid_kernel(%arg0: i32, %arg1: i32, %arg2: i32, %arg3: memref<2x4x256xf32, #tpu.memory_space<vmem>>, %arg4: memref<2x256xf32, #tpu.memory_space<vmem>>, %arg5: memref<2x256xf32, #tpu.memory_space<vmem>>) attributes {dimension_semantics = [#tpu.dimension_semantics<parallel>, #tpu.dimension_semantics<parallel>, #tpu.dimension_semantics<arbitrary>], iteration_bounds = array<i64: 1, 1, 1>, scalar_prefetch = 0 : i64, scratch_operands = 1 : i64, tpu.core_type = #tpu.core_type<tc>, window_params = [{transform_indices = @transform_0, window_bounds = array<i64: 2, 4, 256>}, {transform_indices = @transform_1, window_bounds = array<i64: 2, 256>}]} {
    %c0_i32 = arith.constant 0 : i32
    %0 = arith.cmpi eq, %arg2, %c0_i32 : i32
    %1 = arith.extui %0 : i1 to i32
    %c0_i32_0 = arith.constant 0 : i32
    %2 = arith.cmpi ne, %1, %c0_i32_0 : i32
    scf.if %2 {
      %cst_9 = arith.constant 0.000000e+00 : f32
      %11 = vector.broadcast %cst_9 : f32 to vector<2x256xf32>
      %c0_10 = arith.constant 0 : index
      %c0_11 = arith.constant 0 : index
      %12 = vector.load %arg5[%c0_10, %c0_11] : memref<2x256xf32, #tpu.memory_space<vmem>>, vector<2x256xf32>
      tpu.vector_store %arg5[%c0_10, %c0_11], %11 {strides = array<i32>} : memref<2x256xf32, #tpu.memory_space<vmem>>, vector<2x256xf32>,
    } else {
    }
    %c0 = arith.constant 0 : index
    %c0_1 = arith.constant 0 : index
    %3 = vector.load %arg5[%c0, %c0_1] : memref<2x256xf32, #tpu.memory_space<vmem>>, vector<2x256xf32>
    %c0_2 = arith.constant 0 : index
    %c0_3 = arith.constant 0 : index
    %c0_4 = arith.constant 0 : index
    %4 = vector.load %arg3[%c0_2, %c0_3, %c0_4] : memref<2x4x256xf32, #tpu.memory_space<vmem>>, vector<2x4x256xf32>
    %cst = arith.constant dense<0.000000e+00> : vector<2x256xf32>
    %5 = vector.multi_reduction <add>, %4, %cst [1] : vector<2x4x256xf32> to vector<2x256xf32>
    %6 = arith.addf %3, %5 : vector<2x256xf32>
    %c0_5 = arith.constant 0 : index
    %c0_6 = arith.constant 0 : index
    %7 = vector.load %arg5[%c0_5, %c0_6] : memref<2x256xf32, #tpu.memory_space<vmem>>, vector<2x256xf32>
    tpu.vector_store %arg5[%c0_5, %c0_6], %6 {strides = array<i32>} : memref<2x256xf32, #tpu.memory_space<vmem>>, vector<2x256xf32>,
    %c0_i32_7 = arith.constant 0 : i32
    %8 = arith.cmpi eq, %arg2, %c0_i32_7 : i32
    %9 = arith.extui %8 : i1 to i32
    %c0_i32_8 = arith.constant 0 : i32
    %10 = arith.cmpi ne, %9, %c0_i32_8 : i32
    scf.if %10 {
      %c0_9 = arith.constant 0 : index
      %c0_10 = arith.constant 0 : index
      %11 = vector.load %arg5[%c0_9, %c0_10] : memref<2x256xf32, #tpu.memory_space<vmem>>, vector<2x256xf32>
      %c0_11 = arith.constant 0 : index
      %c0_12 = arith.constant 0 : index
      %12 = vector.load %arg4[%c0_11, %c0_12] : memref<2x256xf32, #tpu.memory_space<vmem>>, vector<2x256xf32>
      tpu.vector_store %arg4[%c0_11, %c0_12], %11 {strides = array<i32>} : memref<2x256xf32, #tpu.memory_space<vmem>>, vector<2x256xf32>,
    } else {
    }
    return
  }
  func.func @transform_0(%arg0: i32, %arg1: i32, %arg2: i32) -> (i32, i32, i32) {
    %c0_i32 = arith.constant 0 : i32
    return %arg0, %arg2, %arg1 : i32, i32, i32
  }
  func.func @transform_1(%arg0: i32, %arg1: i32, %arg2: i32) -> (i32, i32) {
    %c0_i32 = arith.constant 0 : i32
    return %arg0, %arg1 : i32, i32
  }
}

</mosaic_0001>

<llo_original>
// kernel: tpu_custom_call.1
$region0: #{tpu_custom_call.1}
  #allocation0 [shape = 'u32[]', space=smem, size = 0x4, offset = 0x4, fixed_abs, tag = 'smem constant byte address 0x4 - core index']
  #allocation1 [shape = 'u32[144,128]{1,0:T(1,128)}', space=vmem, size = 0x12000, scoped, tag = 'internal scratch']
  #allocation2 [shape = 'f32[2,256]{1,0:T(2,128)}', space=vmem, size = 0x800, scoped, tag = 'scratch operand']
  %s0 = inlined_call_operand.hbm [shape: f32[2,4,256], index: 0, kind: input, shape index: {}]
  %s1 = inlined_call_operand.hbm [shape: f32[2,256], index: 1, kind: output, shape index: {}]
  %s2 = sld [smem:[#allocation0]]
  $region26: #{tpu_custom_call.1} parent=0
    _
  %s4 = ssub.s32 1, %s2
  %s5 = scalar_select 0, %s4, %s2
  $region1: #{tpu_custom_call.1} parent=0
    #allocation3 [shape = 'u8[8192]{0}', space=vmem, size = 0x2000, scoped, tag = 'input window, operand 0, single buffered']
    #allocation4 [shape = 's32[1]{0}', space=sflag, size = 0x4, scoped, tag = 'scoped memory for tpu_custom_call.1']
    #allocation5 [shape = 's32[1]{0}', space=sflag, size = 0x4, scoped, tag = 'scoped memory for tpu_custom_call.1']
    #allocation6 [shape = 'u8[2048]{0}', space=vmem, size = 0x800, scoped, tag = 'output window, operand 0, single buffered']
    %6 = vsyncpa [#allocation4], 0
    %7 = vsyncpa [#allocation5], 0
    // Predicated region
    $region2: #{tpu_custom_call.1} parent=1 // pred_check
      _
    $region3: #{tpu_custom_call.1} parent=1 // pred_check_branch
      %9 = sbr.rel (0) target = $region5
    $region4: #{tpu_custom_call.1} parent=1 // pred_region
      %s11 = ssub.s32 256, 256
      %12 = vsyncadd [#allocation4], %s11
      %s13 = sshll.u32 [#allocation3], 4
      %s14 = int_to_ptr.vmem [resolvable:$true] %s13
      %19 = dma.hbm_to_vmem [thread:$0]  %s0, 256, %s14, [#allocation4], 128, 128, 8
    $region5: #{tpu_custom_call.1} parent=1 // pred_fallthru
      _
    // Predicated region
    $region6: #{tpu_custom_call.1} parent=1 // pred_check
      _
    $region7: #{tpu_custom_call.1} parent=1 // pred_check_branch
      %21 = sbr.rel (0) target = $region9
    $region8: #{tpu_custom_call.1} parent=1 // pred_region
      %22 = dma.done [#allocation4], 256
    $region9: #{tpu_custom_call.1} parent=1 // pred_fallthru
      _
    %p23 = scmp.eq.s32.totalorder 0, 0
    // Predicated region
    $region10: #{tpu_custom_call.1} parent=1 // pred_check
      %p24 = pneg %p23
    $region11: #{tpu_custom_call.1} parent=1 // pred_check_branch
      %26 = sbr.rel (%p24) target = $region13
    $region12: #{tpu_custom_call.1} parent=1 // pred_region
      %27 = vst [vmem:[#allocation2] sm:$0xf] 0.0
    $region13: #{tpu_custom_call.1} parent=1 // pred_fallthru
      _
    %v28 = vld [vmem:[#allocation2] sm:$0xf]
    %v29 = vld [vmem:[#allocation3] sm:$0xff]
    %v30 = vld [vmem:[#allocation3 + $0x8] sm:$0xff]
    %v33 = vcombine.high %v29, %v29
    %v34 = vcombine.high %v30, %v30
    %vm37 = vcmask 1043456
    %v38 = vsel %vm37, %v29, 0.0
    %v39 = vrot.slane %v38, 4
    %v40 = vadd.f32 %v38, %v39
    %v41 = vrot.slane %v40, 2
    %v42 = vadd.f32 %v40, %v41
    %v43 = vrot.slane %v42, 1
    %v44 = vadd.f32 %v42, %v43
    %v45 = vsel %vm37, %v33, 0.0
    %v46 = vrot.slane %v45, 4
    %v47 = vadd.f32 %v45, %v46
    %v48 = vrot.slane %v47, 2
    %v49 = vadd.f32 %v47, %v48
    %v50 = vrot.slane %v49, 1
    %v51 = vadd.f32 %v49, %v50
    %v52 = vsel %vm37, %v30, 0.0
    %v53 = vrot.slane %v52, 4
    %v54 = vadd.f32 %v52, %v53
    %v55 = vrot.slane %v54, 2
    %v56 = vadd.f32 %v54, %v55
    %v57 = vrot.slane %v56, 1
    %v58 = vadd.f32 %v56, %v57
    %v59 = vsel %vm37, %v34, 0.0
    %v60 = vrot.slane %v59, 4
    %v61 = vadd.f32 %v59, %v60
    %v62 = vrot.slane %v61, 2
    %v63 = vadd.f32 %v61, %v62
    %v64 = vrot.slane %v63, 1
    %v65 = vadd.f32 %v63, %v64
    %v70 = vcombine.low %v44, %v51
    %v72 = vunpack.c.l.s4 1983009808
    %v73 = vunpack.c.0.s8 %v72
    %v74 = vlaneseq
    %v75 = vshrl.u32 %v74, 7
    %v76 = vsub.s32 %v73, %v75
    %v77 = vrot.slane %v70, %v76
    %v78 = vcombine.low %v58, %v65
    %v80 = vunpack.c.l.s4 1983009808
    %v81 = vunpack.c.0.s8 %v80
    %v82 = vlaneseq
    %v83 = vshrl.u32 %v82, 7
    %v84 = vsub.s32 %v81, %v83
    %v85 = vrot.slane %v78, %v84
    %vm86 = vcmask 1044484
    %v87 = vsel %vm86, %v77, %v77
    %vm88 = vcmask 1046534
    %v89 = vsel %vm88, %v77, %v87
    %v90 = vrot.slane %v85, 7
    %vm91 = vcmask 1041409
    %v92 = vsel %vm91, %v90, %v89
    %vm93 = vcmask 1043459
    %v94 = vsel %vm93, %v90, %v92
    %vm95 = vcmask 1045509
    %v96 = vsel %vm95, %v90, %v94
    %vm97 = vcmask 1047559
    %v98 = vsel %vm97, %v90, %v96
    %v100 = vadd.f32 %v28, %v98
    %101 = vst [vmem:[#allocation2] sm:$0xf] %v100
    // Predicated region
    $region14: #{tpu_custom_call.1} parent=1 // pred_check
      %p102 = pneg %p23
    $region15: #{tpu_custom_call.1} parent=1 // pred_check_branch
      %104 = sbr.rel (%p102) target = $region17
    $region16: #{tpu_custom_call.1} parent=1 // pred_region
      %v105 = vld [vmem:[#allocation2] sm:$0xf]
      %106 = vst [vmem:[#allocation6] sm:$0xf] %v105
    $region17: #{tpu_custom_call.1} parent=1 // pred_fallthru
      _
    // Predicated region
    $region18: #{tpu_custom_call.1} parent=1 // pred_check
      _
    $region19: #{tpu_custom_call.1} parent=1 // pred_check_branch
      %108 = sbr.rel (0) target = $region21
    $region20: #{tpu_custom_call.1} parent=1 // pred_region
      %s110 = ssub.s32 64, 64
      %111 = vsyncadd [#allocation5], %s110
      %s113 = sshll.u32 [#allocation6], 4
      %s114 = int_to_ptr.vmem [resolvable:$true] %s113
      %116 = dma.vmem_to_hbm [thread:$0]  %s114, 64, %s1, [#allocation5]
    $region21: #{tpu_custom_call.1} parent=1 // pred_fallthru
      _
    // Predicated region
    $region22: #{tpu_custom_call.1} parent=1 // pred_check
      _
    $region23: #{tpu_custom_call.1} parent=1 // pred_check_branch
      %118 = sbr.rel (0) target = $region25
    $region24: #{tpu_custom_call.1} parent=1 // pred_region
      %119 = dma.done [#allocation5], 64
    $region25: #{tpu_custom_call.1} parent=1 // pred_fallthru
      _
    %120 = vsyncpa [#allocation4], 1
    %121 = vsyncpa [#allocation5], 1

</llo_original>
